<compile_context>
chip_gen: v6e
topology: v6e:2x2x1
jax: 0.10.0
libtpu: 0.0.40
codegen_flags: <defaults>
</compile_context>

<pallas_src>
import math

import jax
import jax.numpy as jnp
from jax.experimental import pallas as pl
from jax.experimental.pallas import tpu as pltpu

KH, KW = 3, 3  # 3x3 conv


def _vmem_capacity_bytes():
    try:
        return int(pltpu.get_tpu_info().vmem_capacity_bytes)
    except Exception:
        return 64 * 1024 * 1024  # conservative: v7x per-TensorCore VMEM


def _pick_tile_h(H, WC, itemsize, budget_bytes):
    """Largest 8-aligned divisor of H whose working set fits the budget."""
    cands = [th for th in range(8, H + 1, 8) if H % th == 0] or [H]

    def need(th):
        rows = ((th + 2 + 7) // 8) * 8          # sublane padding of the scratch
        return (2 * rows + 2 * th) * WC * itemsize  # halo dbuf + dbuf'd out block

    fitting = [th for th in cands if need(th) <= budget_bytes]
    return max(fitting) if fitting else min(cands)


def _make_kernel(H, W, C, TH, n_row_tiles, in_dtype):
    WC = W * C

    def kernel(x_hbm, w_ref, b_ref, o_ref, buf, sems):
        # x_hbm: (N, H, W*C) raw HBM ref (memory_space=pl.ANY)
        # w_ref: (3, W*C, W*C) block-tridiagonal per-kh weights (VMEM resident)
        # b_ref: (1, W*C) f32 bias tiled along W
        # o_ref: (1, TH, W*C) lane-dense output block
        # buf:   (2, TH+2, W*C) double-buffered row band (+/- 1 halo row)
        # sems:  (2,) DMA semaphores (one per slot)
        n = pl.program_id(0)
        t = pl.program_id(1)
        r0 = t * TH
        slot = t & 1

        def tile_dma(row0, s, action):
            # Same descriptor expressions for start and wait (no dummy sources).
            def run(cp):
                cp.start() if action == "start" else cp.wait()

            if n_row_tiles == 1:
                run(pltpu.make_async_copy(
                    x_hbm.at[n, :, :], buf.at[s, pl.ds(1, TH), :], sems.at[s]))
                return

            @pl.when(row0 == 0)                     # top edge: rows [0, TH+1)
            def _():
                run(pltpu.make_async_copy(
                    x_hbm.at[n, pl.ds(0, TH + 1), :],
                    buf.at[s, pl.ds(1, TH + 1), :], sems.at[s]))

            @pl.when(row0 + TH == H)                # bottom edge: rows [r0-1, H)
            def _():
                run(pltpu.make_async_copy(
                    x_hbm.at[n, pl.ds(row0 - 1, TH + 1), :],
                    buf.at[s, pl.ds(0, TH + 1), :], sems.at[s]))

            @pl.when(jnp.logical_and(row0 > 0, row0 + TH < H))   # interior
            def _():
                run(pltpu.make_async_copy(
                    x_hbm.at[n, pl.ds(row0 - 1, TH + 2), :],
                    buf.at[s], sems.at[s]))

        # Prime the double buffer at the start of each image's row-tile chain.
        # (Per-image prime keeps slot/semaphore bookkeeping core-local under a
        # megacore split of the batch axis; cross-image prefetch is a TODO.)
        @pl.when(t == 0)
        def _():
            tile_dma(r0, slot, "start")

        # Prefetch the next row tile (same image) into the other slot.
        if n_row_tiles > 1:
            @pl.when(t + 1 < n_row_tiles)
            def _():
                tile_dma(r0 + TH, 1 - slot, "start")

        tile_dma(r0, slot, "wait")

        bslot = buf.at[slot]

        # Top/bottom halo row: the DMA never writes it on edge tiles, zero it.
        @pl.when(r0 == 0)
        def _():
            bslot[pl.ds(0, 1), :] = jnp.zeros((1, WC), dtype=in_dtype)

        @pl.when(r0 + TH == H)
        def _():
            bslot[pl.ds(TH + 1, 1), :] = jnp.zeros((1, WC), dtype=in_dtype)

        # 3x3 conv as 3 row-band matmuls against block-tridiagonal weights.
        # Rows [kh, kh+TH) of the band are the kh-shifted LHS; the kw taps and
        # the left/right zero padding live inside w_ref[kh].  The residual is
        # the kh=1 window, so x is streamed exactly once.
        x_center = bslot[pl.ds(1, TH), :]

        acc = jnp.zeros((TH, WC), jnp.float32)
        for kh in range(KH):
            lhs = x_center if kh == 1 else bslot[pl.ds(kh, TH), :]
            if lhs.dtype != w_ref.dtype:
                lhs = lhs.astype(w_ref.dtype)
            acc = acc + jnp.dot(lhs, w_ref[kh],
                                preferred_element_type=jnp.float32)

        out = x_center.astype(jnp.float32) + acc + b_ref[...]  # x + conv + bias
        o_ref[0] = out.astype(o_ref.dtype)                     # dense W*C lanes

    return kernel


def shortcut_block(x_nchw, w_oihw, bias, *, tile_h=None, mxu_dtype=None):
    """x + conv3x3(x) + bias, NCHW in/out (matches ShortcutBlock(Conv2d))."""
    N, C_in, H, W = x_nchw.shape
    assert w_oihw.shape == (C_in, C_in, KH, KW)
    assert bias.shape == (C_in,)

    # Pad channels so W*C is a multiple of 128 (lane-dense blocks everywhere).
    step = 128 // math.gcd(W, 128)
    C = ((C_in + step - 1) // step) * step
    if C != C_in:
        x_nchw = jnp.pad(x_nchw, ((0, 0), (0, C - C_in), (0, 0), (0, 0)))
        w_oihw = jnp.pad(w_oihw, ((0, C - C_in), (0, C - C_in), (0, 0), (0, 0)))
        bias = jnp.pad(bias, (0, C - C_in))
    WC = W * C

    op_dtype = jnp.dtype(mxu_dtype) if mxu_dtype is not None else x_nchw.dtype
    op_itemsize = jnp.dtype(op_dtype).itemsize

    cap = _vmem_capacity_bytes()
    vmem_limit = min(int(0.75 * cap), 96 * 1024 * 1024)
    band_bytes = KH * WC * WC * op_itemsize
    assert 2 * band_bytes <= max(vmem_limit // 3, 8 * 1024 * 1024), (
        "W*C too large for the banded-weight path")  # TODO(synk): im2col path

    if tile_h is None:
        budget = max(vmem_limit // 2 - 2 * band_bytes, 2 * 1024 * 1024)
        tile_h = _pick_tile_h(H, WC, x_nchw.dtype.itemsize, budget)
    assert H % tile_h == 0, "tile_h must divide H"
    assert tile_h % 8 == 0 or tile_h == H
    n_row_tiles = H // tile_h

    # ---- glue (layout only, no padded HBM copy of the activations) ----------
    x_flat = jnp.transpose(x_nchw, (0, 2, 3, 1)).reshape(N, H, WC)  # NHWC flat

    # Block-tridiagonal weights: BAND[kh, w_in*C+ci, w_out*C+co] =
    #   W_hwio[kh, w_in-w_out+1, ci, co] when |w_in-w_out| <= 1, else 0.
    whwio = jnp.transpose(w_oihw, (2, 3, 1, 0)).astype(jnp.float32)  # (3,3,I,O)
    w_in = jnp.arange(W)[:, None, None]
    kw = jnp.arange(KW)[None, :, None]
    w_out = jnp.arange(W)[None, None, :]
    ind = (w_in == (w_out + kw - 1)).astype(jnp.float32)            # (W, 3, W)
    band = jnp.einsum("akb,hkio->haibo", ind, whwio)                 # (3,W,C,W,C)
    band = band.reshape(KH, WC, WC).astype(op_dtype)

    b_tiled = jnp.tile(bias.astype(jnp.float32), W).reshape(1, WC)   # f32 tail

    kernel = _make_kernel(H, W, C, tile_h, n_row_tiles, x_flat.dtype)

    out_flat = pl.pallas_call(
        kernel,
        out_shape=jax.ShapeDtypeStruct((N, H, WC), x_nchw.dtype),
        grid=(N, n_row_tiles),
        in_specs=[
            pl.BlockSpec(memory_space=pl.ANY),                        # x in HBM
            pl.BlockSpec((KH, WC, WC), lambda n, t: (0, 0, 0)),       # weights
            pl.BlockSpec((1, WC), lambda n, t: (0, 0)),               # bias
        ],
        out_specs=pl.BlockSpec((1, tile_h, WC), lambda n, t: (n, t, 0)),
        scratch_shapes=[
            pltpu.VMEM((2, tile_h + 2, WC), x_flat.dtype),            # halo dbuf
            pltpu.SemaphoreType.DMA((2,)),
        ],
        compiler_params=pltpu.CompilerParams(
            dimension_semantics=("parallel", "arbitrary"),
            vmem_limit_bytes=vmem_limit,
        ),
    )(x_flat, band, b_tiled)

    out_nchw = jnp.transpose(out_flat.reshape(N, H, W, C), (0, 3, 1, 2))
    return out_nchw[:, :C_in]


def _reference(x_nchw, w_oihw, bias):
    conv = jax.lax.conv_general_dilated(
        x_nchw, w_oihw, window_strides=(1, 1), padding="SAME",
        dimension_numbers=("NCHW", "OIHW", "NCHW"))
    return x_nchw + conv + bias.reshape(1, -1, 1, 1)


if __name__ == "__main__":
    key = jax.random.PRNGKey(0)
    k1, k2, k3 = jax.random.split(key, 3)

    N, C, H, W = 2, 4, 16, 16
    x = jax.random.normal(k1, (N, C, H, W), dtype=jnp.float32)
    w = 0.1 * jax.random.normal(k2, (C, C, KH, KW), dtype=jnp.float32)  # OIHW
    b = 0.05 * jax.random.normal(k3, (C,), dtype=jnp.float32)

    # tile_h=8 -> two row tiles per image: exercises the edge-tile DMAs, the
    # halo-row zeroing and the double-buffered prefetch chain.
    out = shortcut_block(x, w, b, tile_h=8)
    out = jax.block_until_ready(out)

    ref = _reference(x, w, b)
    assert out.shape == (N, C, H, W)
    assert jnp.allclose(out, ref, atol=2e-3, rtol=2e-3), "mismatch vs reference"

    print("KERNEL_OK")
</pallas_src>

<mosaic_0001>
module attributes {stable_mosaic.version = 11 : i64} {
  func.func @kernel(%arg0: i32, %arg1: i32, %arg2: memref<2x16x128xf32, #tpu.memory_space<any>>, %arg3: memref<3x128x128xf32, #tpu.memory_space<vmem>>, %arg4: memref<1x128xf32, #tpu.memory_space<vmem>>, %arg5: memref<1x8x128xf32, #tpu.memory_space<vmem>>, %arg6: memref<2x10x128xf32, #tpu.memory_space<vmem>>, %arg7: memref<2x!tpu.dma_semaphore, #tpu.memory_space<semaphore_mem>>) attributes {dimension_semantics = [#tpu.dimension_semantics<parallel>, #tpu.dimension_semantics<arbitrary>], iteration_bounds = array<i64: 2, 2>, scalar_prefetch = 0 : i64, scratch_operands = 2 : i64, tpu.core_type = #tpu.core_type<tc>, window_params = [{}, {pipeline_mode = #tpu.pipeline_mode<synchronous>, transform_indices = @transform_1, window_bounds = array<i64: 3, 128, 128>}, {pipeline_mode = #tpu.pipeline_mode<synchronous>, transform_indices = @transform_2, window_bounds = array<i64: 1, 128>}, {transform_indices = @transform_3, window_bounds = array<i64: 1, 8, 128>}]} {
    %c8_i32 = arith.constant 8 : i32
    %0 = arith.muli %arg1, %c8_i32 : i32
    %c1_i32 = arith.constant 1 : i32
    %1 = arith.andi %arg1, %c1_i32 : i32
    %c0_i32 = arith.constant 0 : i32
    %2 = arith.cmpi eq, %arg1, %c0_i32 : i32
    %3 = arith.extui %2 : i1 to i32
    %c0_i32_0 = arith.constant 0 : i32
    %4 = arith.cmpi ne, %3, %c0_i32_0 : i32
    scf.if %4 {
      %c0_i32_42 = arith.constant 0 : i32
      %58 = arith.cmpi eq, %0, %c0_i32_42 : i32
      %59 = arith.extui %58 : i1 to i32
      %c0_i32_43 = arith.constant 0 : i32
      %60 = arith.cmpi ne, %59, %c0_i32_43 : i32
      scf.if %60 {
        %c0_i32_51 = arith.constant 0 : i32
        %c0_i32_52 = arith.constant 0 : i32
        %71 = tpu.memref_slice %arg2[%arg0, %c0_i32_51, %c0_i32_52] : memref<2x16x128xf32, #tpu.memory_space<any>> -> memref<1x9x128xf32, #tpu.memory_space<any>>
        %72 = tpu.memref_squeeze %71 : memref<1x9x128xf32, #tpu.memory_space<any>> -> memref<9x128xf32, #tpu.memory_space<any>>
        %c1_i32_53 = arith.constant 1 : i32
        %c0_i32_54 = arith.constant 0 : i32
        %73 = tpu.memref_slice %arg6[%1, %c1_i32_53, %c0_i32_54] : memref<2x10x128xf32, #tpu.memory_space<vmem>> -> memref<1x9x128xf32, #tpu.memory_space<vmem>>
        %74 = tpu.memref_squeeze %73 : memref<1x9x128xf32, #tpu.memory_space<vmem>> -> memref<9x128xf32, #tpu.memory_space<vmem>>
        %75 = tpu.memref_slice %arg7[%1] : memref<2x!tpu.dma_semaphore, #tpu.memory_space<semaphore_mem>> -> memref<1x!tpu.dma_semaphore, #tpu.memory_space<semaphore_mem>>
        %76 = tpu.memref_squeeze %75 : memref<1x!tpu.dma_semaphore, #tpu.memory_space<semaphore_mem>> -> memref<!tpu.dma_semaphore, #tpu.memory_space<semaphore_mem>>
        tpu.enqueue_dma source(%72 : memref<9x128xf32, #tpu.memory_space<any>>) target(%74 : memref<9x128xf32, #tpu.memory_space<vmem>>) target_semaphore(%76 : memref<!tpu.dma_semaphore, #tpu.memory_space<semaphore_mem>>)
      } else {
      }
      %c8_i32_44 = arith.constant 8 : i32
      %61 = arith.addi %0, %c8_i32_44 : i32
      %c16_i32_45 = arith.constant 16 : i32
      %62 = arith.cmpi eq, %61, %c16_i32_45 : i32
      %63 = arith.extui %62 : i1 to i32
      %c0_i32_46 = arith.constant 0 : i32
      %64 = arith.cmpi ne, %63, %c0_i32_46 : i32
      scf.if %64 {
        %c1_i32_51 = arith.constant 1 : i32
        %71 = arith.subi %0, %c1_i32_51 : i32
        %c0_i32_52 = arith.constant 0 : i32
        %72 = tpu.memref_slice %arg2[%arg0, %71, %c0_i32_52] : memref<2x16x128xf32, #tpu.memory_space<any>> -> memref<1x9x128xf32, #tpu.memory_space<any>>
        %73 = tpu.memref_squeeze %72 : memref<1x9x128xf32, #tpu.memory_space<any>> -> memref<9x128xf32, #tpu.memory_space<any>>
        %c0_i32_53 = arith.constant 0 : i32
        %c0_i32_54 = arith.constant 0 : i32
        %74 = tpu.memref_slice %arg6[%1, %c0_i32_53, %c0_i32_54] : memref<2x10x128xf32, #tpu.memory_space<vmem>> -> memref<1x9x128xf32, #tpu.memory_space<vmem>>
        %75 = tpu.memref_squeeze %74 : memref<1x9x128xf32, #tpu.memory_space<vmem>> -> memref<9x128xf32, #tpu.memory_space<vmem>>
        %76 = tpu.memref_slice %arg7[%1] : memref<2x!tpu.dma_semaphore, #tpu.memory_space<semaphore_mem>> -> memref<1x!tpu.dma_semaphore, #tpu.memory_space<semaphore_mem>>
        %77 = tpu.memref_squeeze %76 : memref<1x!tpu.dma_semaphore, #tpu.memory_space<semaphore_mem>> -> memref<!tpu.dma_semaphore, #tpu.memory_space<semaphore_mem>>
        tpu.enqueue_dma source(%73 : memref<9x128xf32, #tpu.memory_space<any>>) target(%75 : memref<9x128xf32, #tpu.memory_space<vmem>>) target_semaphore(%77 : memref<!tpu.dma_semaphore, #tpu.memory_space<semaphore_mem>>)
      } else {
      }
      %c0_i32_47 = arith.constant 0 : i32
      %65 = arith.cmpi sgt, %0, %c0_i32_47 : i32
      %c8_i32_48 = arith.constant 8 : i32
      %66 = arith.addi %0, %c8_i32_48 : i32
      %c16_i32_49 = arith.constant 16 : i32
      %67 = arith.cmpi slt, %66, %c16_i32_49 : i32
      %68 = arith.andi %65, %67 : i1
      %69 = arith.extui %68 : i1 to i32
      %c0_i32_50 = arith.constant 0 : i32
      %70 = arith.cmpi ne, %69, %c0_i32_50 : i32
      scf.if %70 {
        %c1_i32_51 = arith.constant 1 : i32
        %71 = arith.subi %0, %c1_i32_51 : i32
        %c0_i32_52 = arith.constant 0 : i32
        %72 = tpu.memref_slice %arg2[%arg0, %71, %c0_i32_52] : memref<2x16x128xf32, #tpu.memory_space<any>> -> memref<1x10x128xf32, #tpu.memory_space<any>>
        %73 = tpu.memref_squeeze %72 : memref<1x10x128xf32, #tpu.memory_space<any>> -> memref<10x128xf32, #tpu.memory_space<any>>
        %c0_i32_53 = arith.constant 0 : i32
        %c0_i32_54 = arith.constant 0 : i32
        %74 = tpu.memref_slice %arg6[%1, %c0_i32_53, %c0_i32_54] : memref<2x10x128xf32, #tpu.memory_space<vmem>> -> memref<1x10x128xf32, #tpu.memory_space<vmem>>
        %75 = tpu.memref_squeeze %74 : memref<1x10x128xf32, #tpu.memory_space<vmem>> -> memref<10x128xf32, #tpu.memory_space<vmem>>
        %76 = tpu.memref_slice %arg7[%1] : memref<2x!tpu.dma_semaphore, #tpu.memory_space<semaphore_mem>> -> memref<1x!tpu.dma_semaphore, #tpu.memory_space<semaphore_mem>>
        %77 = tpu.memref_squeeze %76 : memref<1x!tpu.dma_semaphore, #tpu.memory_space<semaphore_mem>> -> memref<!tpu.dma_semaphore, #tpu.memory_space<semaphore_mem>>
        tpu.enqueue_dma source(%73 : memref<10x128xf32, #tpu.memory_space<any>>) target(%75 : memref<10x128xf32, #tpu.memory_space<vmem>>) target_semaphore(%77 : memref<!tpu.dma_semaphore, #tpu.memory_space<semaphore_mem>>)
      } else {
      }
    } else {
    }
    %c1_i32_1 = arith.constant 1 : i32
    %5 = arith.addi %arg1, %c1_i32_1 : i32
    %c2_i32 = arith.constant 2 : i32
    %6 = arith.cmpi slt, %5, %c2_i32 : i32
    %7 = arith.extui %6 : i1 to i32
    %c0_i32_2 = arith.constant 0 : i32
    %8 = arith.cmpi ne, %7, %c0_i32_2 : i32
    scf.if %8 {
      %c8_i32_42 = arith.constant 8 : i32
      %58 = arith.addi %0, %c8_i32_42 : i32
      %c1_i32_43 = arith.constant 1 : i32
      %59 = arith.subi %c1_i32_43, %1 : i32
      %c0_i32_44 = arith.constant 0 : i32
      %60 = arith.cmpi eq, %58, %c0_i32_44 : i32
      %61 = arith.extui %60 : i1 to i32
      %c0_i32_45 = arith.constant 0 : i32
      %62 = arith.cmpi ne, %61, %c0_i32_45 : i32
      scf.if %62 {
        %c0_i32_53 = arith.constant 0 : i32
        %c0_i32_54 = arith.constant 0 : i32
        %73 = tpu.memref_slice %arg2[%arg0, %c0_i32_53, %c0_i32_54] : memref<2x16x128xf32, #tpu.memory_space<any>> -> memref<1x9x128xf32, #tpu.memory_space<any>>
        %74 = tpu.memref_squeeze %73 : memref<1x9x128xf32, #tpu.memory_space<any>> -> memref<9x128xf32, #tpu.memory_space<any>>
        %c1_i32_55 = arith.constant 1 : i32
        %c0_i32_56 = arith.constant 0 : i32
        %75 = tpu.memref_slice %arg6[%59, %c1_i32_55, %c0_i32_56] : memref<2x10x128xf32, #tpu.memory_space<vmem>> -> memref<1x9x128xf32, #tpu.memory_space<vmem>>
        %76 = tpu.memref_squeeze %75 : memref<1x9x128xf32, #tpu.memory_space<vmem>> -> memref<9x128xf32, #tpu.memory_space<vmem>>
        %77 = tpu.memref_slice %arg7[%59] : memref<2x!tpu.dma_semaphore, #tpu.memory_space<semaphore_mem>> -> memref<1x!tpu.dma_semaphore, #tpu.memory_space<semaphore_mem>>
        %78 = tpu.memref_squeeze %77 : memref<1x!tpu.dma_semaphore, #tpu.memory_space<semaphore_mem>> -> memref<!tpu.dma_semaphore, #tpu.memory_space<semaphore_mem>>
        tpu.enqueue_dma source(%74 : memref<9x128xf32, #tpu.memory_space<any>>) target(%76 : memref<9x128xf32, #tpu.memory_space<vmem>>) target_semaphore(%78 : memref<!tpu.dma_semaphore, #tpu.memory_space<semaphore_mem>>)
      } else {
      }
      %c8_i32_46 = arith.constant 8 : i32
      %63 = arith.addi %58, %c8_i32_46 : i32
      %c16_i32_47 = arith.constant 16 : i32
      %64 = arith.cmpi eq, %63, %c16_i32_47 : i32
      %65 = arith.extui %64 : i1 to i32
      %c0_i32_48 = arith.constant 0 : i32
      %66 = arith.cmpi ne, %65, %c0_i32_48 : i32
      scf.if %66 {
        %c1_i32_53 = arith.constant 1 : i32
        %73 = arith.subi %58, %c1_i32_53 : i32
        %c0_i32_54 = arith.constant 0 : i32
        %74 = tpu.memref_slice %arg2[%arg0, %73, %c0_i32_54] : memref<2x16x128xf32, #tpu.memory_space<any>> -> memref<1x9x128xf32, #tpu.memory_space<any>>
        %75 = tpu.memref_squeeze %74 : memref<1x9x128xf32, #tpu.memory_space<any>> -> memref<9x128xf32, #tpu.memory_space<any>>
        %c0_i32_55 = arith.constant 0 : i32
        %c0_i32_56 = arith.constant 0 : i32
        %76 = tpu.memref_slice %arg6[%59, %c0_i32_55, %c0_i32_56] : memref<2x10x128xf32, #tpu.memory_space<vmem>> -> memref<1x9x128xf32, #tpu.memory_space<vmem>>
        %77 = tpu.memref_squeeze %76 : memref<1x9x128xf32, #tpu.memory_space<vmem>> -> memref<9x128xf32, #tpu.memory_space<vmem>>
        %78 = tpu.memref_slice %arg7[%59] : memref<2x!tpu.dma_semaphore, #tpu.memory_space<semaphore_mem>> -> memref<1x!tpu.dma_semaphore, #tpu.memory_space<semaphore_mem>>
        %79 = tpu.memref_squeeze %78 : memref<1x!tpu.dma_semaphore, #tpu.memory_space<semaphore_mem>> -> memref<!tpu.dma_semaphore, #tpu.memory_space<semaphore_mem>>
        tpu.enqueue_dma source(%75 : memref<9x128xf32, #tpu.memory_space<any>>) target(%77 : memref<9x128xf32, #tpu.memory_space<vmem>>) target_semaphore(%79 : memref<!tpu.dma_semaphore, #tpu.memory_space<semaphore_mem>>)
      } else {
      }
      %c0_i32_49 = arith.constant 0 : i32
      %67 = arith.cmpi sgt, %58, %c0_i32_49 : i32
      %c8_i32_50 = arith.constant 8 : i32
      %68 = arith.addi %58, %c8_i32_50 : i32
      %c16_i32_51 = arith.constant 16 : i32
      %69 = arith.cmpi slt, %68, %c16_i32_51 : i32
      %70 = arith.andi %67, %69 : i1
      %71 = arith.extui %70 : i1 to i32
      %c0_i32_52 = arith.constant 0 : i32
      %72 = arith.cmpi ne, %71, %c0_i32_52 : i32
      scf.if %72 {
        %c1_i32_53 = arith.constant 1 : i32
        %73 = arith.subi %58, %c1_i32_53 : i32
        %c0_i32_54 = arith.constant 0 : i32
        %74 = tpu.memref_slice %arg2[%arg0, %73, %c0_i32_54] : memref<2x16x128xf32, #tpu.memory_space<any>> -> memref<1x10x128xf32, #tpu.memory_space<any>>
        %75 = tpu.memref_squeeze %74 : memref<1x10x128xf32, #tpu.memory_space<any>> -> memref<10x128xf32, #tpu.memory_space<any>>
        %c0_i32_55 = arith.constant 0 : i32
        %c0_i32_56 = arith.constant 0 : i32
        %76 = tpu.memref_slice %arg6[%59, %c0_i32_55, %c0_i32_56] : memref<2x10x128xf32, #tpu.memory_space<vmem>> -> memref<1x10x128xf32, #tpu.memory_space<vmem>>
        %77 = tpu.memref_squeeze %76 : memref<1x10x128xf32, #tpu.memory_space<vmem>> -> memref<10x128xf32, #tpu.memory_space<vmem>>
        %78 = tpu.memref_slice %arg7[%59] : memref<2x!tpu.dma_semaphore, #tpu.memory_space<semaphore_mem>> -> memref<1x!tpu.dma_semaphore, #tpu.memory_space<semaphore_mem>>
        %79 = tpu.memref_squeeze %78 : memref<1x!tpu.dma_semaphore, #tpu.memory_space<semaphore_mem>> -> memref<!tpu.dma_semaphore, #tpu.memory_space<semaphore_mem>>
        tpu.enqueue_dma source(%75 : memref<10x128xf32, #tpu.memory_space<any>>) target(%77 : memref<10x128xf32, #tpu.memory_space<vmem>>) target_semaphore(%79 : memref<!tpu.dma_semaphore, #tpu.memory_space<semaphore_mem>>)
      } else {
      }
    } else {
    }
    %c0_i32_3 = arith.constant 0 : i32
    %9 = arith.cmpi eq, %0, %c0_i32_3 : i32
    %10 = arith.extui %9 : i1 to i32
    %c0_i32_4 = arith.constant 0 : i32
    %11 = arith.cmpi ne, %10, %c0_i32_4 : i32
    scf.if %11 {
      %c0_i32_42 = arith.constant 0 : i32
      %c0_i32_43 = arith.constant 0 : i32
      %58 = tpu.memref_slice %arg2[%arg0, %c0_i32_42, %c0_i32_43] : memref<2x16x128xf32, #tpu.memory_space<any>> -> memref<1x9x128xf32, #tpu.memory_space<any>>
      %59 = tpu.memref_squeeze %58 : memref<1x9x128xf32, #tpu.memory_space<any>> -> memref<9x128xf32, #tpu.memory_space<any>>
      %c1_i32_44 = arith.constant 1 : i32
      %c0_i32_45 = arith.constant 0 : i32
      %60 = tpu.memref_slice %arg6[%1, %c1_i32_44, %c0_i32_45] : memref<2x10x128xf32, #tpu.memory_space<vmem>> -> memref<1x9x128xf32, #tpu.memory_space<vmem>>
      %61 = tpu.memref_squeeze %60 : memref<1x9x128xf32, #tpu.memory_space<vmem>> -> memref<9x128xf32, #tpu.memory_space<vmem>>
      %62 = tpu.memref_slice %arg7[%1] : memref<2x!tpu.dma_semaphore, #tpu.memory_space<semaphore_mem>> -> memref<1x!tpu.dma_semaphore, #tpu.memory_space<semaphore_mem>>
      %63 = tpu.memref_squeeze %62 : memref<1x!tpu.dma_semaphore, #tpu.memory_space<semaphore_mem>> -> memref<!tpu.dma_semaphore, #tpu.memory_space<semaphore_mem>>
      tpu.wait_dma2 semaphore(%63 : memref<!tpu.dma_semaphore, #tpu.memory_space<semaphore_mem>>) src(%59 : memref<9x128xf32, #tpu.memory_space<any>>) dst(%61 : memref<9x128xf32, #tpu.memory_space<vmem>>)
    } else {
    }
    %c8_i32_5 = arith.constant 8 : i32
    %12 = arith.addi %0, %c8_i32_5 : i32
    %c16_i32 = arith.constant 16 : i32
    %13 = arith.cmpi eq, %12, %c16_i32 : i32
    %14 = arith.extui %13 : i1 to i32
    %c0_i32_6 = arith.constant 0 : i32
    %15 = arith.cmpi ne, %14, %c0_i32_6 : i32
    scf.if %15 {
      %c1_i32_42 = arith.constant 1 : i32
      %58 = arith.subi %0, %c1_i32_42 : i32
      %c0_i32_43 = arith.constant 0 : i32
      %59 = tpu.memref_slice %arg2[%arg0, %58, %c0_i32_43] : memref<2x16x128xf32, #tpu.memory_space<any>> -> memref<1x9x128xf32, #tpu.memory_space<any>>
      %60 = tpu.memref_squeeze %59 : memref<1x9x128xf32, #tpu.memory_space<any>> -> memref<9x128xf32, #tpu.memory_space<any>>
      %c0_i32_44 = arith.constant 0 : i32
      %c0_i32_45 = arith.constant 0 : i32
      %61 = tpu.memref_slice %arg6[%1, %c0_i32_44, %c0_i32_45] : memref<2x10x128xf32, #tpu.memory_space<vmem>> -> memref<1x9x128xf32, #tpu.memory_space<vmem>>
      %62 = tpu.memref_squeeze %61 : memref<1x9x128xf32, #tpu.memory_space<vmem>> -> memref<9x128xf32, #tpu.memory_space<vmem>>
      %63 = tpu.memref_slice %arg7[%1] : memref<2x!tpu.dma_semaphore, #tpu.memory_space<semaphore_mem>> -> memref<1x!tpu.dma_semaphore, #tpu.memory_space<semaphore_mem>>
      %64 = tpu.memref_squeeze %63 : memref<1x!tpu.dma_semaphore, #tpu.memory_space<semaphore_mem>> -> memref<!tpu.dma_semaphore, #tpu.memory_space<semaphore_mem>>
      tpu.wait_dma2 semaphore(%64 : memref<!tpu.dma_semaphore, #tpu.memory_space<semaphore_mem>>) src(%60 : memref<9x128xf32, #tpu.memory_space<any>>) dst(%62 : memref<9x128xf32, #tpu.memory_space<vmem>>)
    } else {
    }
    %c0_i32_7 = arith.constant 0 : i32
    %16 = arith.cmpi sgt, %0, %c0_i32_7 : i32
    %c8_i32_8 = arith.constant 8 : i32
    %17 = arith.addi %0, %c8_i32_8 : i32
    %c16_i32_9 = arith.constant 16 : i32
    %18 = arith.cmpi slt, %17, %c16_i32_9 : i32
    %19 = arith.andi %16, %18 : i1
    %20 = arith.extui %19 : i1 to i32
    %c0_i32_10 = arith.constant 0 : i32
    %21 = arith.cmpi ne, %20, %c0_i32_10 : i32
    scf.if %21 {
      %c1_i32_42 = arith.constant 1 : i32
      %58 = arith.subi %0, %c1_i32_42 : i32
      %c0_i32_43 = arith.constant 0 : i32
      %59 = tpu.memref_slice %arg2[%arg0, %58, %c0_i32_43] : memref<2x16x128xf32, #tpu.memory_space<any>> -> memref<1x10x128xf32, #tpu.memory_space<any>>
      %60 = tpu.memref_squeeze %59 : memref<1x10x128xf32, #tpu.memory_space<any>> -> memref<10x128xf32, #tpu.memory_space<any>>
      %c0_i32_44 = arith.constant 0 : i32
      %c0_i32_45 = arith.constant 0 : i32
      %61 = tpu.memref_slice %arg6[%1, %c0_i32_44, %c0_i32_45] : memref<2x10x128xf32, #tpu.memory_space<vmem>> -> memref<1x10x128xf32, #tpu.memory_space<vmem>>
      %62 = tpu.memref_squeeze %61 : memref<1x10x128xf32, #tpu.memory_space<vmem>> -> memref<10x128xf32, #tpu.memory_space<vmem>>
      %63 = tpu.memref_slice %arg7[%1] : memref<2x!tpu.dma_semaphore, #tpu.memory_space<semaphore_mem>> -> memref<1x!tpu.dma_semaphore, #tpu.memory_space<semaphore_mem>>
      %64 = tpu.memref_squeeze %63 : memref<1x!tpu.dma_semaphore, #tpu.memory_space<semaphore_mem>> -> memref<!tpu.dma_semaphore, #tpu.memory_space<semaphore_mem>>
      tpu.wait_dma2 semaphore(%64 : memref<!tpu.dma_semaphore, #tpu.memory_space<semaphore_mem>>) src(%60 : memref<10x128xf32, #tpu.memory_space<any>>) dst(%62 : memref<10x128xf32, #tpu.memory_space<vmem>>)
    } else {
    }
    %c0_i32_11 = arith.constant 0 : i32
    %22 = arith.cmpi eq, %0, %c0_i32_11 : i32
    %23 = arith.extui %22 : i1 to i32
    %c0_i32_12 = arith.constant 0 : i32
    %24 = arith.cmpi ne, %23, %c0_i32_12 : i32
    scf.if %24 {
      %cst_42 = arith.constant 0.000000e+00 : f32
      %58 = vector.broadcast %cst_42 : f32 to vector<1x128xf32>
      %c0_i32_43 = arith.constant 0 : i32
      %c0_i32_44 = arith.constant 0 : i32
      %59 = tpu.memref_slice %arg6[%1, %c0_i32_43, %c0_i32_44] : memref<2x10x128xf32, #tpu.memory_space<vmem>> -> memref<1x10x128xf32, #tpu.memory_space<vmem>>
      %60 = tpu.memref_squeeze %59 : memref<1x10x128xf32, #tpu.memory_space<vmem>> -> memref<10x128xf32, #tpu.memory_space<vmem>>
      %c0_45 = arith.constant 0 : index
      %c0_46 = arith.constant 0 : index
      %61 = vector.load %60[%c0_45, %c0_46] : memref<10x128xf32, #tpu.memory_space<vmem>>, vector<1x128xf32>
      tpu.vector_store %60[%c0_45, %c0_46], %58 {strides = array<i32>} : memref<10x128xf32, #tpu.memory_space<vmem>>, vector<1x128xf32>,
    } else {
    }
    %c8_i32_13 = arith.constant 8 : i32
    %25 = arith.addi %0, %c8_i32_13 : i32
    %c16_i32_14 = arith.constant 16 : i32
    %26 = arith.cmpi eq, %25, %c16_i32_14 : i32
    %27 = arith.extui %26 : i1 to i32
    %c0_i32_15 = arith.constant 0 : i32
    %28 = arith.cmpi ne, %27, %c0_i32_15 : i32
    scf.if %28 {
      %cst_42 = arith.constant 0.000000e+00 : f32
      %58 = vector.broadcast %cst_42 : f32 to vector<1x128xf32>
      %c0_i32_43 = arith.constant 0 : i32
      %c0_i32_44 = arith.constant 0 : i32
      %59 = tpu.memref_slice %arg6[%1, %c0_i32_43, %c0_i32_44] : memref<2x10x128xf32, #tpu.memory_space<vmem>> -> memref<1x10x128xf32, #tpu.memory_space<vmem>>
      %60 = tpu.memref_squeeze %59 : memref<1x10x128xf32, #tpu.memory_space<vmem>> -> memref<10x128xf32, #tpu.memory_space<vmem>>
      %c9 = arith.constant 9 : index
      %c0_45 = arith.constant 0 : index
      %61 = vector.load %60[%c9, %c0_45] : memref<10x128xf32, #tpu.memory_space<vmem>>, vector<1x128xf32>
      tpu.vector_store %60[%c9, %c0_45], %58 {strides = array<i32>} : memref<10x128xf32, #tpu.memory_space<vmem>>, vector<1x128xf32>,
    } else {
    }
    %c0_i32_16 = arith.constant 0 : i32
    %c0_i32_17 = arith.constant 0 : i32
    %29 = tpu.memref_slice %arg6[%1, %c0_i32_16, %c0_i32_17] : memref<2x10x128xf32, #tpu.memory_space<vmem>> -> memref<1x10x128xf32, #tpu.memory_space<vmem>>
    %30 = tpu.memref_squeeze %29 : memref<1x10x128xf32, #tpu.memory_space<vmem>> -> memref<10x128xf32, #tpu.memory_space<vmem>>
    %c1 = arith.constant 1 : index
    %c0 = arith.constant 0 : index
    %31 = vector.load %30[%c1, %c0] : memref<10x128xf32, #tpu.memory_space<vmem>>, vector<8x128xf32>
    %cst = arith.constant 0.000000e+00 : f32
    %32 = vector.broadcast %cst : f32 to vector<8x128xf32>
    %c0_i32_18 = arith.constant 0 : i32
    %c0_i32_19 = arith.constant 0 : i32
    %33 = tpu.memref_slice %arg6[%1, %c0_i32_18, %c0_i32_19] : memref<2x10x128xf32, #tpu.memory_space<vmem>> -> memref<1x10x128xf32, #tpu.memory_space<vmem>>
    %34 = tpu.memref_squeeze %33 : memref<1x10x128xf32, #tpu.memory_space<vmem>> -> memref<10x128xf32, #tpu.memory_space<vmem>>
    %c0_20 = arith.constant 0 : index
    %c0_21 = arith.constant 0 : index
    %35 = vector.load %34[%c0_20, %c0_21] : memref<10x128xf32, #tpu.memory_space<vmem>>, vector<8x128xf32>
    %c0_22 = arith.constant 0 : index
    %c0_23 = arith.constant 0 : index
    %c0_24 = arith.constant 0 : index
    %36 = vector.load %arg3[%c0_22, %c0_23, %c0_24] : memref<3x128x128xf32, #tpu.memory_space<vmem>>, vector<1x128x128xf32>
    %37 = vector.shape_cast %36 : vector<1x128x128xf32> to vector<128x128xf32>
    %cst_25 = arith.constant dense<0.000000e+00> : vector<8x128xf32>
    %38 = tpu.matmul %35, %37, %cst_25 {dimension_numbers = #tpu.dot_dimension_numbers<[1], [0], [0], [1], [0, 0, 1, 1], [], []>} : vector<8x128xf32>, vector<128x128xf32>, vector<8x128xf32> -> vector<8x128xf32>
    %39 = arith.addf %32, %38 : vector<8x128xf32>
    %c1_26 = arith.constant 1 : index
    %c0_27 = arith.constant 0 : index
    %c0_28 = arith.constant 0 : index
    %40 = vector.load %arg3[%c1_26, %c0_27, %c0_28] : memref<3x128x128xf32, #tpu.memory_space<vmem>>, vector<1x128x128xf32>
    %41 = vector.shape_cast %40 : vector<1x128x128xf32> to vector<128x128xf32>
    %cst_29 = arith.constant dense<0.000000e+00> : vector<8x128xf32>
    %42 = tpu.matmul %31, %41, %cst_29 {dimension_numbers = #tpu.dot_dimension_numbers<[1], [0], [0], [1], [0, 0, 1, 1], [], []>} : vector<8x128xf32>, vector<128x128xf32>, vector<8x128xf32> -> vector<8x128xf32>
    %43 = arith.addf %39, %42 : vector<8x128xf32>
    %c0_i32_30 = arith.constant 0 : i32
    %c0_i32_31 = arith.constant 0 : i32
    %44 = tpu.memref_slice %arg6[%1, %c0_i32_30, %c0_i32_31] : memref<2x10x128xf32, #tpu.memory_space<vmem>> -> memref<1x10x128xf32, #tpu.memory_space<vmem>>
    %45 = tpu.memref_squeeze %44 : memref<1x10x128xf32, #tpu.memory_space<vmem>> -> memref<10x128xf32, #tpu.memory_space<vmem>>
    %c2 = arith.constant 2 : index
    %c0_32 = arith.constant 0 : index
    %46 = vector.load %45[%c2, %c0_32] : memref<10x128xf32, #tpu.memory_space<vmem>>, vector<8x128xf32>
    %c2_33 = arith.constant 2 : index
    %c0_34 = arith.constant 0 : index
    %c0_35 = arith.constant 0 : index
    %47 = vector.load %arg3[%c2_33, %c0_34, %c0_35] : memref<3x128x128xf32, #tpu.memory_space<vmem>>, vector<1x128x128xf32>
    %48 = vector.shape_cast %47 : vector<1x128x128xf32> to vector<128x128xf32>
    %cst_36 = arith.constant dense<0.000000e+00> : vector<8x128xf32>
    %49 = tpu.matmul %46, %48, %cst_36 {dimension_numbers = #tpu.dot_dimension_numbers<[1], [0], [0], [1], [0, 0, 1, 1], [], []>} : vector<8x128xf32>, vector<128x128xf32>, vector<8x128xf32> -> vector<8x128xf32>
    %50 = arith.addf %43, %49 : vector<8x128xf32>
    %51 = arith.addf %31, %50 : vector<8x128xf32>
    %c0_37 = arith.constant 0 : index
    %c0_38 = arith.constant 0 : index
    %52 = vector.load %arg4[%c0_37, %c0_38] : memref<1x128xf32, #tpu.memory_space<vmem>>, vector<1x128xf32>
    %53 = vector.broadcast %52 : vector<1x128xf32> to vector<8x128xf32>
    %54 = arith.addf %51, %53 : vector<8x128xf32>
    %c0_39 = arith.constant 0 : index
    %c0_40 = arith.constant 0 : index
    %c0_41 = arith.constant 0 : index
    %55 = vector.load %arg5[%c0_39, %c0_40, %c0_41] : memref<1x8x128xf32, #tpu.memory_space<vmem>>, vector<1x8x128xf32>
    %56 = vector.shape_cast %55 : vector<1x8x128xf32> to vector<8x128xf32>
    %57 = vector.shape_cast %54 : vector<8x128xf32> to vector<1x8x128xf32>
    tpu.vector_store %arg5[%c0_39, %c0_40, %c0_41], %57 {strides = array<i32>} : memref<1x8x128xf32, #tpu.memory_space<vmem>>, vector<1x8x128xf32>,
    return
  }
  func.func @transform_1(%arg0: i32, %arg1: i32) -> (i32, i32, i32) {
    %c0_i32 = arith.constant 0 : i32
    %c0_i32_0 = arith.constant 0 : i32
    %c0_i32_1 = arith.constant 0 : i32
    %c0_i32_2 = arith.constant 0 : i32
    return %c0_i32, %c0_i32_0, %c0_i32_1 : i32, i32, i32
  }
  func.func @transform_2(%arg0: i32, %arg1: i32) -> (i32, i32) {
    %c0_i32 = arith.constant 0 : i32
    %c0_i32_0 = arith.constant 0 : i32
    %c0_i32_1 = arith.constant 0 : i32
    return %c0_i32, %c0_i32_0 : i32, i32
  }
  func.func @transform_3(%arg0: i32, %arg1: i32) -> (i32, i32, i32) {
    %c0_i32 = arith.constant 0 : i32
    %c0_i32_0 = arith.constant 0 : i32
    return %arg0, %arg1, %c0_i32 : i32, i32, i32
  }
}

</mosaic_0001>

<llo_original>
// kernel: tpu_custom_call.1
$region0: #{tpu_custom_call.1}
  #allocation0 [shape = 'u32[]', space=smem, size = 0x4, offset = 0x4, fixed_abs, tag = 'smem constant byte address 0x4 - core index']
  #allocation1 [shape = 'u32[144,128]{1,0:T(1,128)}', space=vmem, size = 0x12000, scoped, tag = 'internal scratch']
  #allocation2 [shape = 'f32[2,10,128]{2,1,0:T(8,128)}', space=vmem, size = 0x4000, scoped, tag = 'scratch operand']
  #allocation3 [shape = 's32[2]{0}', space=sflag, size = 0x8, scoped, tag = 'scratch operand']
  #allocation8 [shape = 's32[]', space=sflag, size = 0x4, offset = 0, fixed_abs, tag = 'sflag constant byte address 0x0 - dummy sync flag']
  #allocation9 [shape = 's32[]', space=sflag, size = 0x4, offset = 0, fixed_abs, tag = 'sflag constant byte address 0x0 - dummy sync flag']
  #allocation10 [shape = 'u32[]', space=smem, size = 0x4, offset = 0x44, fixed_abs, tag = 'smem constant byte address 0x44 - assertion arg 0']
  #allocation11 [shape = 'u32[]', space=smem, size = 0x4, offset = 0x48, fixed_abs, tag = 'smem constant byte address 0x48 - assertion arg 1']
  #allocation12 [shape = 's32[]', space=sflag, size = 0x4, offset = 0, fixed_abs, tag = 'sflag constant byte address 0x0 - dummy sync flag']
  #allocation13 [shape = 's32[]', space=sflag, size = 0x4, offset = 0, fixed_abs, tag = 'sflag constant byte address 0x0 - dummy sync flag']
  #allocation14 [shape = 's32[]', space=sflag, size = 0x4, offset = 0, fixed_abs, tag = 'sflag constant byte address 0x0 - dummy sync flag']
  #allocation15 [shape = 's32[]', space=sflag, size = 0x4, offset = 0, fixed_abs, tag = 'sflag constant byte address 0x0 - dummy sync flag']
  #allocation16 [shape = 's32[]', space=sflag, size = 0x4, offset = 0, fixed_abs, tag = 'sflag constant byte address 0x0 - dummy sync flag']
  #allocation17 [shape = 's32[]', space=sflag, size = 0x4, offset = 0, fixed_abs, tag = 'sflag constant byte address 0x0 - dummy sync flag']
  #allocation18 [shape = 's32[]', space=sflag, size = 0x4, offset = 0, fixed_abs, tag = 'sflag constant byte address 0x0 - dummy sync flag']
  #allocation19 [shape = 's32[]', space=sflag, size = 0x4, offset = 0, fixed_abs, tag = 'sflag constant byte address 0x0 - dummy sync flag']
  #allocation20 [shape = 's32[]', space=sflag, size = 0x4, offset = 0, fixed_abs, tag = 'sflag constant byte address 0x0 - dummy sync flag']
  #allocation21 [shape = 's32[]', space=sflag, size = 0x4, offset = 0, fixed_abs, tag = 'sflag constant byte address 0x0 - dummy sync flag']
  %s0 = inlined_call_operand.hbm [shape: f32[2,16,128], index: 0, kind: input, shape index: {}]
  %s1 = inlined_call_operand.hbm [shape: f32[3,128,128], index: 1, kind: input, shape index: {}]
  %s2 = inlined_call_operand.vmem [shape: f32[1,128], index: 2, kind: input, shape index: {}]
  %s3 = inlined_call_operand.hbm [shape: f32[2,16,128], index: 3, kind: output, shape index: {}]
  %s4 = sld [smem:[#allocation0]]
  $region121: #{tpu_custom_call.1} parent=0
    _
  %s6 = ssub.s32 1, %s4
  %s7 = scalar_select 0, %s6, %s4
  $region1: #{tpu_custom_call.1} parent=0
    #allocation4 [shape = 'u8[196608]{0}', space=vmem, size = 0x30000, scoped, tag = 'input window, operand 1, single buffered']
    #allocation5 [shape = 's32[2]{0}', space=sflag, size = 0x8, scoped, tag = 'scoped memory for tpu_custom_call.1']
    #allocation6 [shape = 's32[2]{0}', space=sflag, size = 0x8, scoped, tag = 'scoped memory for tpu_custom_call.1']
    #allocation7 [shape = 'u8[8192]{0}', space=vmem, size = 0x2000, scoped, tag = 'output window, operand 0']
    %8 = vsyncpa [#allocation5], 0
    %9 = vsyncpa [#allocation6], 0
    %s10 = scalar_lea.sflag [#allocation6], 1
    %11 = vsyncpa %s10, 0
    loop: start=0, step=1, limit=6
    $region2: #{tpu_custom_call.1} parent=1 // loop_pre_header
      _
    $region3: #{tpu_custom_call.1} parent=1 // loop_header
      %s13 = sphi 0, %s17
      %p14 = scmp.ge.s32.totalorder %s13, 6
      %s20 = sphi 0, %s32
      %s21 = sphi 0, %s28
      %s22 = sphi 0, %s20
      %s23 = sphi 0, %s21
      %s24 = sphi 0, %s22
      %s25 = sphi 0, %s23
      %s33 = sphi 0, %s33
      %s35 = sphi 0, %s33
      %s36 = sphi 0, %s35
      %s50 = sphi 0, %s36
      %s54 = sphi 0, %s54
      %s56 = sphi 0, %s54
      %s57 = sphi 0, %s56
      %s71 = sphi 0, %s57
      %s79 = sphi 0, %s81
      %s82 = sphi 0, %s79
      %s83 = sphi 0, %s82
      %s99 = sphi 0, %s83
    $region4: #{tpu_custom_call.1} parent=1 // loop_header_branch
      %16 = sbr.rel (%p14) target = $region8
    $region5: #{tpu_custom_call.1} parent=1 // loop_body
      %s18 = ssub.s32 %s13, 1
      %s19 = ssub.s32 %s13, 2
      %s26 = sadd.s32 1, %s21
      %p27 = scmp.ge.s32.totalorder %s26, 2
      %s28 = scalar_select %p27, 0, %s26
      %s29 = sadd.s32 1, %s20
      %s30 = scalar_select %p27, %s29, %s20
      %p31 = scmp.ge.s32.totalorder %s30, 2
      %s32 = scalar_select %p31, 0, %s30
      %s34 = sadd.s32 %s33, 1
      %p37 = scmp.eq.s32.totalorder %s13, 3
      %p38 = scmp.ne.s32.totalorder %s33, %s35
      %p39 = scmp.eq.s32.totalorder %s13, 0
      %p40 = por %p38, %p39
      %p41 = scmp.ne.s32.totalorder %s33, %s35
      %p42 = scmp.eq.s32.totalorder %s18, 3
      %p43 = por %p41, %p42
      %p44 = scmp.ne.s32.totalorder %s35, %s36
      %p45 = scmp.eq.s32.totalorder %s18, 0
      %p46 = por %p44, %p45
      %p47 = scmp.ne.s32.totalorder %s35, %s36
      %p48 = scmp.eq.s32.totalorder %s19, 3
      %p49 = por %p47, %p48
      %p51 = scmp.ne.s32.totalorder %s36, %s50
      %p52 = scmp.eq.s32.totalorder %s19, 0
      %p53 = por %p51, %p52
      %s55 = sadd.s32 %s54, 1
      %p58 = scmp.eq.s32.totalorder %s13, 3
      %p59 = scmp.ne.s32.totalorder %s54, %s56
      %p60 = scmp.eq.s32.totalorder %s13, 0
      %p61 = por %p59, %p60
      %p62 = scmp.ne.s32.totalorder %s54, %s56
      %p63 = scmp.eq.s32.totalorder %s18, 3
      %p64 = por %p62, %p63
      %p65 = scmp.ne.s32.totalorder %s56, %s57
      %p66 = scmp.eq.s32.totalorder %s18, 0
      %p67 = por %p65, %p66
      %p68 = scmp.ne.s32.totalorder %s56, %s57
      %p69 = scmp.eq.s32.totalorder %s19, 3
      %p70 = por %p68, %p69
      %p72 = scmp.ne.s32.totalorder %s57, %s71
      %p73 = scmp.eq.s32.totalorder %s19, 0
      %p74 = por %p72, %p73
      %s75 = ssub.s32 %s20, %s32
      %s76 = ssub.s32 %s21, %s28
      %s77 = sor.u32 %s75, %s76
      %p78 = scmp.eq.s32.totalorder %s77, 0
      %s80 = sadd.s32 %s79, 1
      %s81 = scalar_select %p78, %s79, %s80
      %p84 = pneg %p78
      %p85 = scmp.eq.s32.totalorder %s13, 3
      %p86 = por %p84, %p85
      %p87 = scmp.ne.s32.totalorder %s79, %s82
      %p88 = scmp.eq.s32.totalorder %s13, 0
      %p89 = por %p87, %p88
      %p90 = scmp.ne.s32.totalorder %s79, %s82
      %p91 = scmp.eq.s32.totalorder %s18, 3
      %p92 = por %p90, %p91
      %p93 = scmp.ne.s32.totalorder %s82, %s83
      %p94 = scmp.eq.s32.totalorder %s18, 0
      %p95 = por %p93, %p94
      %p96 = scmp.ne.s32.totalorder %s82, %s83
      %p97 = scmp.eq.s32.totalorder %s19, 3
      %p98 = por %p96, %p97
      %p100 = scmp.ne.s32.totalorder %s83, %s99
      %p101 = scmp.eq.s32.totalorder %s19, 0
      %p102 = por %p100, %p101
      %p103 = scmp.le.s32.totalorder 1, %s13
      %p104 = scmp.lt.s32.totalorder %s13, 5
      %p105 = pnand %p103, %p104
      %p106 = pneg %p105
      // Predicated region
      $region9: #{tpu_custom_call.1} parent=5 // pred_check
        _
      $region10: #{tpu_custom_call.1} parent=5 // pred_check_branch
        %108 = sbr.rel (%p105) target = $region12
      $region11: #{tpu_custom_call.1} parent=5 // pred_region
        %s109 = ssub.s32 %s13, 1
        // Predicated region
        $region13: #{tpu_custom_call.1} parent=11 // pred_check
          %p110 = pneg %p46
        $region14: #{tpu_custom_call.1} parent=11 // pred_check_branch
          %112 = sbr.rel (%p110) target = $region16
        $region15: #{tpu_custom_call.1} parent=11 // pred_region
          %s114 = ssub.s32 6144, 6144
          %115 = vsyncadd [#allocation5], %s114
          %s116 = sshll.u32 [#allocation4], 4
          %s117 = int_to_ptr.vmem [resolvable:$true] %s116
          %122 = dma.hbm_to_vmem [thread:$0]  %s1, 6144, %s117, [#allocation5], 128, 128, 8
        $region16: #{tpu_custom_call.1} parent=11 // pred_fallthru
          _
        // Predicated region
        $region17: #{tpu_custom_call.1} parent=11 // pred_check
          %p123 = pneg %p67
        $region18: #{tpu_custom_call.1} parent=11 // pred_check_branch
          %125 = sbr.rel (%p123) target = $region20
        $region19: #{tpu_custom_call.1} parent=11 // pred_region
          _
        $region20: #{tpu_custom_call.1} parent=11 // pred_fallthru
          _
      $region12: #{tpu_custom_call.1} parent=5 // pred_fallthru
        _
      %p126 = scmp.lt.s32.totalorder %s13, 4
      // Predicated region
      $region21: #{tpu_custom_call.1} parent=5 // pred_check
        %p127 = pneg %p126
      $region22: #{tpu_custom_call.1} parent=5 // pred_check_branch
        %129 = sbr.rel (%p127) target = $region24
      $region23: #{tpu_custom_call.1} parent=5 // pred_region
        _
      $region24: #{tpu_custom_call.1} parent=5 // pred_fallthru
        _
      %p130 = scmp.le.s32.totalorder 1, %s13
      %p131 = scmp.lt.s32.totalorder %s13, 5
      %p132 = pnand %p130, %p131
      %p133 = pneg %p132
      // Predicated region
      $region25: #{tpu_custom_call.1} parent=5 // pred_check
        _
      $region26: #{tpu_custom_call.1} parent=5 // pred_check_branch
        %135 = sbr.rel (%p132) target = $region28
      $region27: #{tpu_custom_call.1} parent=5 // pred_region
        %s136 = ssub.s32 %s13, 1
        // Predicated region
        $region29: #{tpu_custom_call.1} parent=27 // pred_check
          %p137 = pneg %p46
        $region30: #{tpu_custom_call.1} parent=27 // pred_check_branch
          %139 = sbr.rel (%p137) target = $region32
        $region31: #{tpu_custom_call.1} parent=27 // pred_region
          %140 = dma.done [#allocation5], 6144
        $region32: #{tpu_custom_call.1} parent=27 // pred_fallthru
          _
        %p141 = pneg %p46
        %p142 = pneg %p43
        %p143 = pneg %p67
        %p144 = pneg %p64
        %p145 = pneg %p95
        %p146 = pneg %p92
        %s147 = sand.u32 %s82, 1
        %s148 = scalar_lea.sflag [#allocation6], %s147
        %s149 = sand.u32 %s82, 1
        %s150 = smul.addr %s149, 8
        %s151 = scalar_lea.vmem [#allocation7], %s150
        %s152 = smul.u32 %s23, 8
        %s153 = sand.u32 %s23, 1
        %p154 = scmp.eq.s32.totalorder %s23, 0
        // Predicated region
        $region33: #{tpu_custom_call.1} parent=27 // pred_check
          %p155 = pneg %p154
        $region34: #{tpu_custom_call.1} parent=27 // pred_check_branch
          %157 = sbr.rel (%p155) target = $region36
        $region35: #{tpu_custom_call.1} parent=27 // pred_region
          %p158 = scmp.eq.s32.totalorder %s152, 0
          // Predicated region
          $region37: #{tpu_custom_call.1} parent=35 // pred_check
            %p159 = pneg %p158
          $region38: #{tpu_custom_call.1} parent=35 // pred_check_branch
            %161 = sbr.rel (%p159) target = $region40
          $region39: #{tpu_custom_call.1} parent=35 // pred_region
            %s162 = smul.u32 %s22, 16
            %s163 = smul.addr %s162, 16
            %s164 = scalar_lea.hbm %s0, %s163
            %s165 = smul.u32 %s153, 16
            %s166 = sadd.s32 1, %s165
            %s167 = scalar_lea.vmem [#allocation2], %s166
            %s168 = scalar_lea.sflag [#allocation3], %s153
            // Predicated region
            $region41: #{tpu_custom_call.1} parent=39 // pred_check
              _
            $region42: #{tpu_custom_call.1} parent=39 // pred_check_branch
              %170 = sbr.rel target = $region44
            $region43: #{tpu_custom_call.1} parent=39 // pred_region
              %171 = sst [smem:[#allocation10]] [#allocation9]
              %172 = sst [smem:[#allocation11]] [#allocation8]
            $region44: #{tpu_custom_call.1} parent=39 // pred_fallthru
              _
            %174 = shalt.err (0)
            %s176 = sshll.u32 %s167, 4
            %s177 = int_to_ptr.vmem [resolvable:$true] %s176
            %179 = dma.hbm_to_vmem [thread:$0]  %s164, 144, %s177, %s168
          $region40: #{tpu_custom_call.1} parent=35 // pred_fallthru
            _
          %s180 = sadd.s32 %s152, 8
          %p181 = scmp.eq.s32.totalorder %s180, 16
          // Predicated region
          $region45: #{tpu_custom_call.1} parent=35 // pred_check
            %p182 = pneg %p181
          $region46: #{tpu_custom_call.1} parent=35 // pred_check_branch
            %184 = sbr.rel (%p182) target = $region48
          $region47: #{tpu_custom_call.1} parent=35 // pred_region
            %s185 = ssub.s32 %s152, 1
            %s186 = smul.u32 %s22, 16
            %s187 = sadd.s32 %s185, %s186
            %s188 = smul.addr %s187, 16
            %s189 = scalar_lea.hbm %s0, %s188
            %s190 = smul.u32 %s153, 16
            %s191 = scalar_lea.vmem [#allocation2], %s190
            %s192 = scalar_lea.sflag [#allocation3], %s153
            // Predicated region
            $region49: #{tpu_custom_call.1} parent=47 // pred_check
              _
            $region50: #{tpu_custom_call.1} parent=47 // pred_check_branch
              %194 = sbr.rel target = $region52
            $region51: #{tpu_custom_call.1} parent=47 // pred_region
              %195 = sst [smem:[#allocation10]] [#allocation13]
              %196 = sst [smem:[#allocation11]] [#allocation12]
            $region52: #{tpu_custom_call.1} parent=47 // pred_fallthru
              _
            %198 = shalt.err (0)
            %s200 = sshll.u32 %s191, 4
            %s201 = int_to_ptr.vmem [resolvable:$true] %s200
            %203 = dma.hbm_to_vmem [thread:$0]  %s189, 144, %s201, %s192
          $region48: #{tpu_custom_call.1} parent=35 // pred_fallthru
            _
          %p204 = scmp.gt.s32.totalorder %s152, 0
          %p205 = scmp.lt.s32.totalorder %s180, 16
          %p206 = pnand %p204, %p205
          %p207 = pneg %p206
          // Predicated region
          $region53: #{tpu_custom_call.1} parent=35 // pred_check
            _
          $region54: #{tpu_custom_call.1} parent=35 // pred_check_branch
            %209 = sbr.rel (%p206) target = $region56
          $region55: #{tpu_custom_call.1} parent=35 // pred_region
            %s210 = ssub.s32 %s152, 1
            %s211 = smul.u32 %s22, 16
            %s212 = sadd.s32 %s210, %s211
            %s213 = smul.addr %s212, 16
            %s214 = scalar_lea.hbm %s0, %s213
            %s215 = smul.u32 %s153, 16
            %s216 = scalar_lea.vmem [#allocation2], %s215
            %s217 = scalar_lea.sflag [#allocation3], %s153
            // Predicated region
            $region57: #{tpu_custom_call.1} parent=55 // pred_check
              _
            $region58: #{tpu_custom_call.1} parent=55 // pred_check_branch
              %219 = sbr.rel target = $region60
            $region59: #{tpu_custom_call.1} parent=55 // pred_region
              %220 = sst [smem:[#allocation10]] [#allocation15]
              %221 = sst [smem:[#allocation11]] [#allocation14]
            $region60: #{tpu_custom_call.1} parent=55 // pred_fallthru
              _
            %223 = shalt.err (0)
            %s225 = sshll.u32 %s216, 4
            %s226 = int_to_ptr.vmem [resolvable:$true] %s225
            %228 = dma.hbm_to_vmem [thread:$0]  %s214, 160, %s226, %s217
          $region56: #{tpu_custom_call.1} parent=35 // pred_fallthru
            _
        $region36: #{tpu_custom_call.1} parent=27 // pred_fallthru
          _
        %s229 = sadd.s32 %s23, 1
        %p230 = scmp.lt.s32.totalorder %s229, 2
        // Predicated region
        $region61: #{tpu_custom_call.1} parent=27 // pred_check
          %p231 = pneg %p230
        $region62: #{tpu_custom_call.1} parent=27 // pred_check_branch
          %233 = sbr.rel (%p231) target = $region64
        $region63: #{tpu_custom_call.1} parent=27 // pred_region
          %s234 = sadd.s32 %s152, 8
          %s235 = ssub.s32 1, %s153
          %p236 = scmp.eq.s32.totalorder %s234, 0
          // Predicated region
          $region65: #{tpu_custom_call.1} parent=63 // pred_check
            %p237 = pneg %p236
          $region66: #{tpu_custom_call.1} parent=63 // pred_check_branch
            %239 = sbr.rel (%p237) target = $region68
          $region67: #{tpu_custom_call.1} parent=63 // pred_region
            %s240 = smul.u32 %s22, 16
            %s241 = smul.addr %s240, 16
            %s242 = scalar_lea.hbm %s0, %s241
            %s243 = smul.u32 %s235, 16
            %s244 = sadd.s32 1, %s243
            %s245 = scalar_lea.vmem [#allocation2], %s244
            %s246 = scalar_lea.sflag [#allocation3], %s235
            // Predicated region
            $region69: #{tpu_custom_call.1} parent=67 // pred_check
              _
            $region70: #{tpu_custom_call.1} parent=67 // pred_check_branch
              %248 = sbr.rel target = $region72
            $region71: #{tpu_custom_call.1} parent=67 // pred_region
              %249 = sst [smem:[#allocation10]] [#allocation17]
              %250 = sst [smem:[#allocation11]] [#allocation16]
            $region72: #{tpu_custom_call.1} parent=67 // pred_fallthru
              _
            %252 = shalt.err (0)
            %s254 = sshll.u32 %s245, 4
            %s255 = int_to_ptr.vmem [resolvable:$true] %s254
            %257 = dma.hbm_to_vmem [thread:$0]  %s242, 144, %s255, %s246
          $region68: #{tpu_custom_call.1} parent=63 // pred_fallthru
            _
          %s258 = sadd.s32 %s152, 16
          %p259 = scmp.eq.s32.totalorder %s258, 16
          // Predicated region
          $region73: #{tpu_custom_call.1} parent=63 // pred_check
            %p260 = pneg %p259
          $region74: #{tpu_custom_call.1} parent=63 // pred_check_branch
            %262 = sbr.rel (%p260) target = $region76
          $region75: #{tpu_custom_call.1} parent=63 // pred_region
            %s263 = sadd.s32 %s152, 7
            %s264 = smul.u32 %s22, 16
            %s265 = sadd.s32 %s263, %s264
            %s266 = smul.addr %s265, 16
            %s267 = scalar_lea.hbm %s0, %s266
            %s268 = smul.u32 %s235, 16
            %s269 = scalar_lea.vmem [#allocation2], %s268
            %s270 = scalar_lea.sflag [#allocation3], %s235
            // Predicated region
            $region77: #{tpu_custom_call.1} parent=75 // pred_check
              _
            $region78: #{tpu_custom_call.1} parent=75 // pred_check_branch
              %272 = sbr.rel target = $region80
            $region79: #{tpu_custom_call.1} parent=75 // pred_region
              %273 = sst [smem:[#allocation10]] [#allocation19]
              %274 = sst [smem:[#allocation11]] [#allocation18]
            $region80: #{tpu_custom_call.1} parent=75 // pred_fallthru
              _
            %276 = shalt.err (0)
            %s278 = sshll.u32 %s269, 4
            %s279 = int_to_ptr.vmem [resolvable:$true] %s278
            %281 = dma.hbm_to_vmem [thread:$0]  %s267, 144, %s279, %s270
          $region76: #{tpu_custom_call.1} parent=63 // pred_fallthru
            _
          %p282 = scmp.gt.s32.totalorder %s234, 0
          %p283 = scmp.lt.s32.totalorder %s258, 16
          %p284 = pnand %p282, %p283
          %p285 = pneg %p284
          // Predicated region
          $region81: #{tpu_custom_call.1} parent=63 // pred_check
            _
          $region82: #{tpu_custom_call.1} parent=63 // pred_check_branch
            %287 = sbr.rel (%p284) target = $region84
          $region83: #{tpu_custom_call.1} parent=63 // pred_region
            %s288 = sadd.s32 %s152, 7
            %s289 = smul.u32 %s22, 16
            %s290 = sadd.s32 %s288, %s289
            %s291 = smul.addr %s290, 16
            %s292 = scalar_lea.hbm %s0, %s291
            %s293 = smul.u32 %s235, 16
            %s294 = scalar_lea.vmem [#allocation2], %s293
            %s295 = scalar_lea.sflag [#allocation3], %s235
            // Predicated region
            $region85: #{tpu_custom_call.1} parent=83 // pred_check
              _
            $region86: #{tpu_custom_call.1} parent=83 // pred_check_branch
              %297 = sbr.rel target = $region88
            $region87: #{tpu_custom_call.1} parent=83 // pred_region
              %298 = sst [smem:[#allocation10]] [#allocation21]
              %299 = sst [smem:[#allocation11]] [#allocation20]
            $region88: #{tpu_custom_call.1} parent=83 // pred_fallthru
              _
            %301 = shalt.err (0)
            %s303 = sshll.u32 %s294, 4
            %s304 = int_to_ptr.vmem [resolvable:$true] %s303
            %306 = dma.hbm_to_vmem [thread:$0]  %s292, 160, %s304, %s295
          $region84: #{tpu_custom_call.1} parent=63 // pred_fallthru
            _
        $region64: #{tpu_custom_call.1} parent=27 // pred_fallthru
          _
        %p307 = scmp.eq.s32.totalorder %s152, 0
        // Predicated region
        $region89: #{tpu_custom_call.1} parent=27 // pred_check
          %p308 = pneg %p307
        $region90: #{tpu_custom_call.1} parent=27 // pred_check_branch
          %310 = sbr.rel (%p308) target = $region92
        $region91: #{tpu_custom_call.1} parent=27 // pred_region
          %s311 = scalar_lea.sflag [#allocation3], %s153
          %s312 = smul.u32 9, 1
          %s313 = sshll.u32 %s312, 4
          %314 = dma.done %s311, %s313
        $region92: #{tpu_custom_call.1} parent=27 // pred_fallthru
          _
        %s315 = sadd.s32 %s152, 8
        %p316 = scmp.eq.s32.totalorder %s315, 16
        // Predicated region
        $region93: #{tpu_custom_call.1} parent=27 // pred_check
          %p317 = pneg %p316
        $region94: #{tpu_custom_call.1} parent=27 // pred_check_branch
          %319 = sbr.rel (%p317) target = $region96
        $region95: #{tpu_custom_call.1} parent=27 // pred_region
          %s320 = scalar_lea.sflag [#allocation3], %s153
          %s321 = smul.u32 9, 1
          %s322 = sshll.u32 %s321, 4
          %323 = dma.done %s320, %s322
        $region96: #{tpu_custom_call.1} parent=27 // pred_fallthru
          _
        %p324 = scmp.gt.s32.totalorder %s152, 0
        %p325 = scmp.lt.s32.totalorder %s315, 16
        %p326 = pnand %p324, %p325
        %p327 = pneg %p326
        // Predicated region
        $region97: #{tpu_custom_call.1} parent=27 // pred_check
          _
        $region98: #{tpu_custom_call.1} parent=27 // pred_check_branch
          %329 = sbr.rel (%p326) target = $region100
        $region99: #{tpu_custom_call.1} parent=27 // pred_region
          %s330 = scalar_lea.sflag [#allocation3], %s153
          %s331 = smul.u32 10, 1
          %s332 = sshll.u32 %s331, 4
          %333 = dma.done %s330, %s332
        $region100: #{tpu_custom_call.1} parent=27 // pred_fallthru
          _
        // Predicated region
        $region101: #{tpu_custom_call.1} parent=27 // pred_check
          %p334 = pneg %p307
        $region102: #{tpu_custom_call.1} parent=27 // pred_check_branch
          %336 = sbr.rel (%p334) target = $region104
        $region103: #{tpu_custom_call.1} parent=27 // pred_region
          %s337 = smul.u32 %s153, 16
          %s338 = scalar_lea.vmem [#allocation2], %s337
          %339 = vst [vmem:[%s338] sm:$0x1] 0.0
        $region104: #{tpu_custom_call.1} parent=27 // pred_fallthru
          _
        // Predicated region
        $region105: #{tpu_custom_call.1} parent=27 // pred_check
          %p340 = pneg %p316
        $region106: #{tpu_custom_call.1} parent=27 // pred_check_branch
          %342 = sbr.rel (%p340) target = $region108
        $region107: #{tpu_custom_call.1} parent=27 // pred_region
          %s343 = smul.u32 %s153, 16
          %s344 = scalar_lea.vmem [#allocation2], %s343
          %345 = vst [vmem:[%s344 + $0x9] sm:$0x1] 0.0
        $region108: #{tpu_custom_call.1} parent=27 // pred_fallthru
          _
        %s346 = smul.u32 %s153, 16
        %s347 = scalar_lea.vmem [#allocation2], %s346
        %v348 = vld [vmem:[%s347 + $0x1] sm:$0xff]
        %v349 = vld [vmem:[%s347] sm:$0xff]
        %v350 = vld [vmem:[#allocation4] sm:$0xff]
        %v351 = vld [vmem:[#allocation4 + $0x8] sm:$0xff]
        %v352 = vld [vmem:[#allocation4 + $0x10] sm:$0xff]
        %v353 = vld [vmem:[#allocation4 + $0x18] sm:$0xff]
        %v354 = vld [vmem:[#allocation4 + $0x20] sm:$0xff]
        %v355 = vld [vmem:[#allocation4 + $0x28] sm:$0xff]
        %v356 = vld [vmem:[#allocation4 + $0x30] sm:$0xff]
        %v357 = vld [vmem:[#allocation4 + $0x38] sm:$0xff]
        %v358 = vld [vmem:[#allocation4 + $0x40] sm:$0xff]
        %v359 = vld [vmem:[#allocation4 + $0x48] sm:$0xff]
        %v360 = vld [vmem:[#allocation4 + $0x50] sm:$0xff]
        %v361 = vld [vmem:[#allocation4 + $0x58] sm:$0xff]
        %v362 = vld [vmem:[#allocation4 + $0x60] sm:$0xff]
        %v363 = vld [vmem:[#allocation4 + $0x68] sm:$0xff]
        %v364 = vld [vmem:[#allocation4 + $0x70] sm:$0xff]
        %v365 = vld [vmem:[#allocation4 + $0x78] sm:$0xff]
        %s366 = scalar_lea.vmem [#allocation4], 128
        %v367 = vld [vmem:[%s366] sm:$0xff]
        %v368 = vld [vmem:[%s366 + $0x8] sm:$0xff]
        %v369 = vld [vmem:[%s366 + $0x10] sm:$0xff]
        %v370 = vld [vmem:[%s366 + $0x18] sm:$0xff]
        %v371 = vld [vmem:[%s366 + $0x20] sm:$0xff]
        %v372 = vld [vmem:[%s366 + $0x28] sm:$0xff]
        %v373 = vld [vmem:[%s366 + $0x30] sm:$0xff]
        %v374 = vld [vmem:[%s366 + $0x38] sm:$0xff]
        %v375 = vld [vmem:[%s366 + $0x40] sm:$0xff]
        %v376 = vld [vmem:[%s366 + $0x48] sm:$0xff]
        %v377 = vld [vmem:[%s366 + $0x50] sm:$0xff]
        %v378 = vld [vmem:[%s366 + $0x58] sm:$0xff]
        %v379 = vld [vmem:[%s366 + $0x60] sm:$0xff]
        %v380 = vld [vmem:[%s366 + $0x68] sm:$0xff]
        %v381 = vld [vmem:[%s366 + $0x70] sm:$0xff]
        %v382 = vld [vmem:[%s366 + $0x78] sm:$0xff]
        %383 = vmatprep.subr.mxu0 0.0
        %384 = vmatpush1.msra.mxu0 %v382
        %385 = vmatprep.subr.mxu0 0.0
        %386 = vmatpush1.msra.mxu0 %v381
        %387 = vmatprep.subr.mxu0 0.0
        %388 = vmatpush1.msra.mxu0 %v380
        %389 = vmatprep.subr.mxu0 0.0
        %390 = vmatpush1.msra.mxu0 %v379
        %391 = vmatprep.subr.mxu0 0.0
        %392 = vmatpush1.msra.mxu0 %v378
        %393 = vmatprep.subr.mxu0 0.0
        %394 = vmatpush1.msra.mxu0 %v377
        %395 = vmatprep.subr.mxu0 0.0
        %396 = vmatpush1.msra.mxu0 %v376
        %397 = vmatprep.subr.mxu0 0.0
        %398 = vmatpush1.msra.mxu0 %v375
        %399 = vmatprep.subr.mxu0 0.0
        %400 = vmatpush1.msra.mxu0 %v374
        %401 = vmatprep.subr.mxu0 0.0
        %402 = vmatpush1.msra.mxu0 %v373
        %403 = vmatprep.subr.mxu0 0.0
        %404 = vmatpush1.msra.mxu0 %v372
        %405 = vmatprep.subr.mxu0 0.0
        %406 = vmatpush1.msra.mxu0 %v371
        %407 = vmatprep.subr.mxu0 0.0
        %408 = vmatpush1.msra.mxu0 %v370
        %409 = vmatprep.subr.mxu0 0.0
        %410 = vmatpush1.msra.mxu0 %v369
        %411 = vmatprep.subr.mxu0 0.0
        %412 = vmatpush1.msra.mxu0 %v368
        %413 = vmatprep.subr.mxu0 0.0
        %414 = vmatpush1.msra.mxu0 %v367
        %415 = vmatprep.subr.mxu0 0.0
        %416 = vmatpush2.msra.mxu0 0.0
        %417 = vmatprep.subr.mxu0 0.0
        %418 = vmatpush2.msra.mxu0 0.0
        %419 = vmatprep.subr.mxu0 0.0
        %420 = vmatpush2.msra.mxu0 0.0
        %421 = vmatprep.subr.mxu0 0.0
        %422 = vmatpush2.msra.mxu0 0.0
        %423 = vmatprep.subr.mxu0 0.0
        %424 = vmatpush2.msra.mxu0 0.0
        %425 = vmatprep.subr.mxu0 0.0
        %426 = vmatpush2.msra.mxu0 0.0
        %427 = vmatprep.subr.mxu0 0.0
        %428 = vmatpush2.msra.mxu0 0.0
        %429 = vmatprep.subr.mxu0 0.0
        %430 = vmatpush2.msra.mxu0 0.0
        %431 = vmatprep.subr.mxu0 0.0
        %432 = vmatpush2.msra.mxu0 0.0
        %433 = vmatprep.subr.mxu0 0.0
        %434 = vmatpush2.msra.mxu0 0.0
        %435 = vmatprep.subr.mxu0 0.0
        %436 = vmatpush2.msra.mxu0 0.0
        %437 = vmatprep.subr.mxu0 0.0
        %438 = vmatpush2.msra.mxu0 0.0
        %439 = vmatprep.subr.mxu0 0.0
        %440 = vmatpush2.msra.mxu0 0.0
        %441 = vmatprep.subr.mxu0 0.0
        %442 = vmatpush2.msra.mxu0 0.0
        %443 = vmatprep.subr.mxu0 0.0
        %444 = vmatpush2.msra.mxu0 0.0
        %445 = vmatprep.subr.mxu0 0.0
        %446 = vmatpush2.msra.mxu0 0.0
        %447 = vmatprep.mubr.f32.mxu0 0.0
        %448 = vmatmul.mubr.f32.gmra.mxu0 %v348
        %v449 = vpop.f32.mrf.mxu0
        %v450 = vadd.f32 0.0, %v449
        %v451 = vpop.f32.mrf.mxu0
        %452 = vdwg.mxu0
        %453 = vmatprep.subr.mxu0 0.0
        %454 = vmatpush1.msra.mxu0 %v365
        %455 = vmatprep.subr.mxu0 0.0
        %456 = vmatpush1.msra.mxu0 %v364
        %457 = vmatprep.subr.mxu0 0.0
        %458 = vmatpush1.msra.mxu0 %v363
        %459 = vmatprep.subr.mxu0 0.0
        %460 = vmatpush1.msra.mxu0 %v362
        %461 = vmatprep.subr.mxu0 0.0
        %462 = vmatpush1.msra.mxu0 %v361
        %463 = vmatprep.subr.mxu0 0.0
        %464 = vmatpush1.msra.mxu0 %v360
        %465 = vmatprep.subr.mxu0 0.0
        %466 = vmatpush1.msra.mxu0 %v359
        %467 = vmatprep.subr.mxu0 0.0
        %468 = vmatpush1.msra.mxu0 %v358
        %469 = vmatprep.subr.mxu0 0.0
        %470 = vmatpush1.msra.mxu0 %v357
        %471 = vmatprep.subr.mxu0 0.0
        %472 = vmatpush1.msra.mxu0 %v356
        %473 = vmatprep.subr.mxu0 0.0
        %474 = vmatpush1.msra.mxu0 %v355
        %475 = vmatprep.subr.mxu0 0.0
        %476 = vmatpush1.msra.mxu0 %v354
        %477 = vmatprep.subr.mxu0 0.0
        %478 = vmatpush1.msra.mxu0 %v353
        %479 = vmatprep.subr.mxu0 0.0
        %480 = vmatpush1.msra.mxu0 %v352
        %481 = vmatprep.subr.mxu0 0.0
        %482 = vmatpush1.msra.mxu0 %v351
        %483 = vmatprep.subr.mxu0 0.0
        %484 = vmatpush1.msra.mxu0 %v350
        %485 = vmatprep.subr.mxu0 0.0
        %486 = vmatpush2.msra.mxu0 0.0
        %487 = vmatprep.subr.mxu0 0.0
        %488 = vmatpush2.msra.mxu0 0.0
        %489 = vmatprep.subr.mxu0 0.0
        %490 = vmatpush2.msra.mxu0 0.0
        %491 = vmatprep.subr.mxu0 0.0
        %492 = vmatpush2.msra.mxu0 0.0
        %493 = vmatprep.subr.mxu0 0.0
        %494 = vmatpush2.msra.mxu0 0.0
        %495 = vmatprep.subr.mxu0 0.0
        %496 = vmatpush2.msra.mxu0 0.0
        %497 = vmatprep.subr.mxu0 0.0
        %498 = vmatpush2.msra.mxu0 0.0
        %499 = vmatprep.subr.mxu0 0.0
        %500 = vmatpush2.msra.mxu0 0.0
        %501 = vmatprep.subr.mxu0 0.0
        %502 = vmatpush2.msra.mxu0 0.0
        %503 = vmatprep.subr.mxu0 0.0
        %504 = vmatpush2.msra.mxu0 0.0
        %505 = vmatprep.subr.mxu0 0.0
        %506 = vmatpush2.msra.mxu0 0.0
        %507 = vmatprep.subr.mxu0 0.0
        %508 = vmatpush2.msra.mxu0 0.0
        %509 = vmatprep.subr.mxu0 0.0
        %510 = vmatpush2.msra.mxu0 0.0
        %511 = vmatprep.subr.mxu0 0.0
        %512 = vmatpush2.msra.mxu0 0.0
        %513 = vmatprep.subr.mxu0 0.0
        %514 = vmatpush2.msra.mxu0 0.0
        %515 = vmatprep.subr.mxu0 0.0
        %516 = vmatpush2.msra.mxu0 0.0
        %517 = vmatprep.mubr.f32.mxu0 0.0
        %518 = vmatmul.mubr.f32.gmra.mxu0 %v349
        %v519 = vpop.f32.mrf.mxu0
        %v520 = vadd.f32 %v450, %v519
        %v521 = vpop.f32.mrf.mxu0
        %522 = vdwg.mxu0
        %v523 = vld [vmem:[%s347 + $0x2] sm:$0xff]
        %s524 = scalar_lea.vmem [#allocation4], 256
        %v525 = vld [vmem:[%s524] sm:$0xff]
        %v526 = vld [vmem:[%s524 + $0x8] sm:$0xff]
        %v527 = vld [vmem:[%s524 + $0x10] sm:$0xff]
        %v528 = vld [vmem:[%s524 + $0x18] sm:$0xff]
        %v529 = vld [vmem:[%s524 + $0x20] sm:$0xff]
        %v530 = vld [vmem:[%s524 + $0x28] sm:$0xff]
        %v531 = vld [vmem:[%s524 + $0x30] sm:$0xff]
        %v532 = vld [vmem:[%s524 + $0x38] sm:$0xff]
        %v533 = vld [vmem:[%s524 + $0x40] sm:$0xff]
        %v534 = vld [vmem:[%s524 + $0x48] sm:$0xff]
        %v535 = vld [vmem:[%s524 + $0x50] sm:$0xff]
        %v536 = vld [vmem:[%s524 + $0x58] sm:$0xff]
        %v537 = vld [vmem:[%s524 + $0x60] sm:$0xff]
        %v538 = vld [vmem:[%s524 + $0x68] sm:$0xff]
        %v539 = vld [vmem:[%s524 + $0x70] sm:$0xff]
        %v540 = vld [vmem:[%s524 + $0x78] sm:$0xff]
        %541 = vmatprep.subr.mxu0 0.0
        %542 = vmatpush1.msra.mxu0 %v540
        %543 = vmatprep.subr.mxu0 0.0
        %544 = vmatpush1.msra.mxu0 %v539
        %545 = vmatprep.subr.mxu0 0.0
        %546 = vmatpush1.msra.mxu0 %v538
        %547 = vmatprep.subr.mxu0 0.0
        %548 = vmatpush1.msra.mxu0 %v537
        %549 = vmatprep.subr.mxu0 0.0
        %550 = vmatpush1.msra.mxu0 %v536
        %551 = vmatprep.subr.mxu0 0.0
        %552 = vmatpush1.msra.mxu0 %v535
        %553 = vmatprep.subr.mxu0 0.0
        %554 = vmatpush1.msra.mxu0 %v534
        %555 = vmatprep.subr.mxu0 0.0
        %556 = vmatpush1.msra.mxu0 %v533
        %557 = vmatprep.subr.mxu0 0.0
        %558 = vmatpush1.msra.mxu0 %v532
        %559 = vmatprep.subr.mxu0 0.0
        %560 = vmatpush1.msra.mxu0 %v531
        %561 = vmatprep.subr.mxu0 0.0
        %562 = vmatpush1.msra.mxu0 %v530
        %563 = vmatprep.subr.mxu0 0.0
        %564 = vmatpush1.msra.mxu0 %v529
        %565 = vmatprep.subr.mxu0 0.0
        %566 = vmatpush1.msra.mxu0 %v528
        %567 = vmatprep.subr.mxu0 0.0
        %568 = vmatpush1.msra.mxu0 %v527
        %569 = vmatprep.subr.mxu0 0.0
        %570 = vmatpush1.msra.mxu0 %v526
        %571 = vmatprep.subr.mxu0 0.0
        %572 = vmatpush1.msra.mxu0 %v525
        %573 = vmatprep.subr.mxu0 0.0
        %574 = vmatpush2.msra.mxu0 0.0
        %575 = vmatprep.subr.mxu0 0.0
        %576 = vmatpush2.msra.mxu0 0.0
        %577 = vmatprep.subr.mxu0 0.0
        %578 = vmatpush2.msra.mxu0 0.0
        %579 = vmatprep.subr.mxu0 0.0
        %580 = vmatpush2.msra.mxu0 0.0
        %581 = vmatprep.subr.mxu0 0.0
        %582 = vmatpush2.msra.mxu0 0.0
        %583 = vmatprep.subr.mxu0 0.0
        %584 = vmatpush2.msra.mxu0 0.0
        %585 = vmatprep.subr.mxu0 0.0
        %586 = vmatpush2.msra.mxu0 0.0
        %587 = vmatprep.subr.mxu0 0.0
        %588 = vmatpush2.msra.mxu0 0.0
        %589 = vmatprep.subr.mxu0 0.0
        %590 = vmatpush2.msra.mxu0 0.0
        %591 = vmatprep.subr.mxu0 0.0
        %592 = vmatpush2.msra.mxu0 0.0
        %593 = vmatprep.subr.mxu0 0.0
        %594 = vmatpush2.msra.mxu0 0.0
        %595 = vmatprep.subr.mxu0 0.0
        %596 = vmatpush2.msra.mxu0 0.0
        %597 = vmatprep.subr.mxu0 0.0
        %598 = vmatpush2.msra.mxu0 0.0
        %599 = vmatprep.subr.mxu0 0.0
        %600 = vmatpush2.msra.mxu0 0.0
        %601 = vmatprep.subr.mxu0 0.0
        %602 = vmatpush2.msra.mxu0 0.0
        %603 = vmatprep.subr.mxu0 0.0
        %604 = vmatpush2.msra.mxu0 0.0
        %605 = vmatprep.mubr.f32.mxu0 0.0
        %606 = vmatmul.mubr.f32.gmra.mxu0 %v523
        %v607 = vpop.f32.mrf.mxu0
        %v608 = vadd.f32 0.0, %v607
        %v609 = vpop.f32.mrf.mxu0
        %610 = vdwg.mxu0
        %v611 = vadd.f32 %v520, %v608
        %v612 = vadd.f32 %v348, %v611
        %v613 = vld [vmem:[%s2] sm:$0x1]
        %v615 = vlaneseq
        %v616 = vshrl.u32 %v615, 7
        %v617 = vsub.s32 0, %v616
        %v618 = vrot.slane %v613, %v617
        %v620 = vadd.f32 %v612, %v618
        %621 = vst [vmem:[%s151] sm:$0xff] %v620
        %s622 = sand.u32 %s82, 1
        %s623 = scalar_lea.sflag [#allocation6], %s622
        %s624 = sand.u32 %s82, 1
        %s625 = smul.addr %s624, 8
        %s626 = scalar_lea.vmem [#allocation7], %s625
        // Predicated region
        $region109: #{tpu_custom_call.1} parent=27 // pred_check
          %p627 = pneg %p92
        $region110: #{tpu_custom_call.1} parent=27 // pred_check_branch
          %629 = sbr.rel (%p627) target = $region112
        $region111: #{tpu_custom_call.1} parent=27 // pred_region
          %s631 = ssub.s32 128, 128
          %632 = vsyncadd %s623, %s631
          %s633 = smul.addr %s22, 2
          %s634 = sadd.s32 %s23, %s633
          %s635 = smul.addr %s634, 128
          %s636 = scalar_lea.hbm %s3, %s635
          %s638 = sshll.u32 %s626, 4
          %s639 = int_to_ptr.vmem [resolvable:$true] %s638
          %641 = dma.vmem_to_hbm [thread:$0]  %s639, 128, %s636, %s623
        $region112: #{tpu_custom_call.1} parent=27 // pred_fallthru
          _
      $region28: #{tpu_custom_call.1} parent=5 // pred_fallthru
        _
      %p642 = scmp.le.s32.totalorder 2, %s13
      // Predicated region
      $region113: #{tpu_custom_call.1} parent=5 // pred_check
        %p643 = pneg %p642
      $region114: #{tpu_custom_call.1} parent=5 // pred_check_branch
        %645 = sbr.rel (%p643) target = $region116
      $region115: #{tpu_custom_call.1} parent=5 // pred_region
        %s646 = ssub.s32 %s13, 2
        // Predicated region
        $region117: #{tpu_custom_call.1} parent=115 // pred_check
          %p647 = pneg %p98
        $region118: #{tpu_custom_call.1} parent=115 // pred_check_branch
          %649 = sbr.rel (%p647) target = $region120
        $region119: #{tpu_custom_call.1} parent=115 // pred_region
          %s650 = sand.u32 %s83, 1
          %s651 = scalar_lea.sflag [#allocation6], %s650
          %s652 = sand.u32 %s83, 1
          %s653 = smul.addr %s652, 8
          %s654 = scalar_lea.vmem [#allocation7], %s653
          %655 = dma.done %s651, 128
        $region120: #{tpu_custom_call.1} parent=115 // pred_fallthru
          _
      $region116: #{tpu_custom_call.1} parent=5 // pred_fallthru
        _
    $region6: #{tpu_custom_call.1} parent=1 // loop_footer
      %s17 = sadd.s32 1, %s13
    $region7: #{tpu_custom_call.1} parent=1 // loop_footer_branch
      %12 = sbr.rel target = $region3
    $region8: #{tpu_custom_call.1} parent=1 // loop_exit
      _
    %656 = vsyncpa [#allocation5], 1
    %s657 = scalar_lea.sflag [#allocation5], 1
    %658 = vsyncpa %s657, 1
    %659 = vsyncpa [#allocation6], 1
    %s660 = scalar_lea.sflag [#allocation6], 1
    %661 = vsyncpa %s660, 1
  %662 = vsyncmov [#allocation3]
  %s663 = vpop.sfrf %662
  %p664 = scmp.eq.s32.totalorder %s663, 0
  %p665 = pneg %p664
  %667 = shalt.err (%p665)
  %s668 = scalar_lea.sflag [#allocation3], 1
  %669 = vsyncmov %s668
  %s670 = vpop.sfrf %669
  %p671 = scmp.eq.s32.totalorder %s670, 0
  %p672 = pneg %p671
  %674 = shalt.err (%p672)

</llo_original>
